<compile_context>
chip_gen: v7x
topology: tpu7x:2x2x1
jax: 0.10.0
libtpu: 0.0.40
codegen_flags: <defaults>
</compile_context>

<pallas_src>
import functools

import jax
import jax.numpy as jnp
import numpy as np
from jax.experimental import pallas as pl
from jax.experimental.pallas import tpu as pltpu

LOG_STD_MAX = 2
LOG_STD_MIN = -10


def _round_up(x, m):
    return ((x + m - 1) // m) * m


def _resident_spec():
    """Whole-array VMEM-resident input: loaded once, single-buffered."""
    ms = getattr(pltpu, "MemorySpace", None) or getattr(pltpu, "TPUMemorySpace")
    return pl.BlockSpec(memory_space=ms.VMEM)


def _tpu_defaults():
    """Per-generation knobs: (is_v7x, vmem cap, default batch tile, MXU lane mult)."""
    kind = ""
    try:
        kind = (jax.devices()[0].device_kind or "").lower()
    except Exception:
        pass
    is_v7 = "v7" in kind
    is_v5 = "v5" in kind
    vmem_phys = None
    try:
        vmem_phys = int(pltpu.get_tpu_info().vmem_capacity_bytes)
    except Exception:
        vmem_phys = None
    if not vmem_phys or vmem_phys <= 0:
        vmem_phys = (64 << 20) if is_v7 else (128 << 20)
    vmem_cap = (vmem_phys * 3) // 4          # leave headroom for Mosaic internal scratch
    block_b = 512 if vmem_cap >= (72 << 20) else 256
    mxu_k = 128 if is_v5 else 256            # MXU pass size: 128 on v5e, 256 on v6e/v7x
    return is_v7, vmem_cap, block_b, mxu_k


def _choose_batch_tile(batch, block_b):
    if batch <= block_b:
        return batch                         # single exact tile, no padding copy
    # Prefer a multiple-of-16 tile (bf16 sublane packing) that divides the batch
    # exactly so the wrapper never materializes a padded copy of `s`.
    for cand in range(block_b, 15, -16):
        if batch % cand == 0:
            return cand
    return block_b


def _policy_kernel(n_hidden, compute_dtype, *refs):
    """Fused MLP + Gaussian-policy squash for one batch tile.

    refs = (s_ref,                                  # [TB, dState] streamed
            W_0, b_0, ..., W_out, b_out,            # resident, zero-padded
            scale_vec, bias_vec, mean_mask,         # [1, N_pad] resident epilogue coeffs
            out_ref)                                # [TB, N_pad] lane-dense output
    """
    s_ref = refs[0]
    out_ref = refs[-1]
    scale_ref, bias_ref, mask_ref = refs[-4], refs[-3], refs[-2]
    wb = refs[1:-4]                                 # 2 * (n_hidden + 1) refs

    # ---- hidden layers: compute_dtype operands, f32 MXU accumulation ----
    h = s_ref[...].astype(compute_dtype)
    for l in range(n_hidden):
        w = wb[2 * l][...]
        b = wb[2 * l + 1][...]                      # [1, dh_pad] f32
        z = jnp.dot(h, w, preferred_element_type=jnp.float32) + b
        h = jnp.maximum(z, 0.0).astype(compute_dtype)

    # ---- output layer: head zero-padded to a multiple of 128 lanes ----
    w_out = wb[2 * n_hidden][...]
    b_out = wb[2 * n_hidden + 1][...]               # [1, n_pad] f32
    raw = jnp.dot(h, w_out, preferred_element_type=jnp.float32) + b_out

    # ---- squash epilogue (f32 VPU/EUP), per-lane coefficients fold both halves:
    #   mean cols (mask=1): affine = tanh * action_scale + action_bias
    #   std  cols (mask=0): affine = log_std_min + (tanh + 1) * half_range -> exp
    t = jnp.tanh(raw)
    affine = t * scale_ref[...] + bias_ref[...]
    m = mask_ref[...]
    out = m * affine + (1.0 - m) * jnp.exp(affine)
    out_ref[...] = out.astype(out_ref.dtype)


def normal_policy_forward(
    s,                 # [B, dState]
    hidden_ws,         # nHidden weights: (dState, dHidden), (dHidden, dHidden), ...
    hidden_bs,         # nHidden biases: (dHidden,)
    w_out,             # (dHidden, 2*dAction)
    b_out,             # (2*dAction,)
    action_scale,      # scalar or (dAction,)
    action_bias,       # scalar or (dAction,)
    log_std_min=LOG_STD_MIN,
    log_std_max=LOG_STD_MAX,
    *,
    block_b=None,
    compute_dtype=jnp.bfloat16,
    out_dtype=None,
):
    s = jnp.asarray(s)
    batch, d_state = s.shape
    n_hidden = len(hidden_ws)
    d_hidden = int(hidden_ws[0].shape[1])
    two_da = int(w_out.shape[1])
    d_action = two_da // 2
    n_pad = _round_up(two_da, 128)
    out_dtype = compute_dtype if out_dtype is None else out_dtype

    is_v7, vmem_cap, default_block_b, mxu_k = _tpu_defaults()
    if block_b is None:
        block_b = default_block_b

    # ---- batch tiling: avoid a wrapper-side padded copy whenever possible ----
    tb = _choose_batch_tile(batch, block_b)
    b_pad = _round_up(batch, tb)
    s_in = s if b_pad == batch else jnp.pad(s, ((0, b_pad - batch), (0, 0)))

    # ---- zero-pad hidden width to a full MXU lane multiple (inert zeros) ----
    dh_pad = _round_up(d_hidden, mxu_k if d_hidden > 128 else 128)

    ws_p, bs_p = [], []
    for l, (w, b) in enumerate(zip(hidden_ws, hidden_bs)):
        w = jnp.asarray(w).astype(compute_dtype)
        b = jnp.asarray(b).astype(jnp.float32).reshape(-1)
        in_dim = d_state if l == 0 else dh_pad
        wp = jnp.zeros((in_dim, dh_pad), compute_dtype).at[:w.shape[0], :d_hidden].set(w)
        bp = jnp.zeros((1, dh_pad), jnp.float32).at[0, :d_hidden].set(b)
        ws_p.append(wp)
        bs_p.append(bp)

    # TODO(synk): on v7x, fp8 hidden weights (MXU-native) would halve resident
    # VMEM; kept at compute_dtype (bf16) to preserve accuracy vs. the reference.
    w_out_p = jnp.zeros((dh_pad, n_pad), compute_dtype)
    w_out_p = w_out_p.at[:d_hidden, :two_da].set(jnp.asarray(w_out).astype(compute_dtype))
    b_out_p = jnp.zeros((1, n_pad), jnp.float32)
    b_out_p = b_out_p.at[0, :two_da].set(jnp.asarray(b_out).astype(jnp.float32).reshape(-1))

    # ---- resident [1, n_pad] epilogue coefficients (fold mean/std selection) ----
    half_range = 0.5 * (float(log_std_max) - float(log_std_min))
    a_scale = jnp.broadcast_to(jnp.asarray(action_scale, jnp.float32).reshape(-1), (d_action,))
    a_bias = jnp.broadcast_to(jnp.asarray(action_bias, jnp.float32).reshape(-1), (d_action,))
    scale_vec = jnp.zeros((1, n_pad), jnp.float32)
    scale_vec = scale_vec.at[0, :d_action].set(a_scale)
    scale_vec = scale_vec.at[0, d_action:two_da].set(half_range)
    bias_vec = jnp.zeros((1, n_pad), jnp.float32)
    bias_vec = bias_vec.at[0, :d_action].set(a_bias)
    bias_vec = bias_vec.at[0, d_action:two_da].set(float(log_std_min) + half_range)
    mean_mask = jnp.ones((1, n_pad), jnp.float32)        # 1 -> affine, 0 -> exp(affine)
    mean_mask = mean_mask.at[0, d_action:two_da].set(0.0)

    # ---- BlockSpecs: stream only the batch; everything else is VMEM-resident ----
    in_specs = [pl.BlockSpec((tb, d_state), lambda i: (i, 0))]
    in_specs += [_resident_spec() for _ in range(2 * (n_hidden + 1) + 3)]
    out_specs = pl.BlockSpec((tb, n_pad), lambda i: (i, 0))
    grid = (b_pad // tb,)

    # ---- VMEM budget: residents single-buffered, streamed in/out double-buffered ----
    c_sz = np.dtype(compute_dtype).itemsize
    o_sz = np.dtype(out_dtype).itemsize
    s_sz = np.dtype(s.dtype).itemsize
    weight_bytes = (sum(int(np.prod(w.shape)) * c_sz for w in ws_p)
                    + sum(int(np.prod(b.shape)) * 4 for b in bs_p)
                    + dh_pad * n_pad * c_sz + 4 * n_pad * 4)
    stream_bytes = 2 * tb * d_state * s_sz + 2 * tb * n_pad * o_sz
    act_bytes = 3 * tb * max(dh_pad, n_pad) * 4
    need = int(1.25 * (weight_bytes + stream_bytes + act_bytes)) + (4 << 20)
    vmem_limit = int(min(max(need, 32 << 20), vmem_cap))

    # v7x: actually split the batch axis across the two TensorCores.
    if is_v7 and grid[0] >= 2 and hasattr(pltpu, "CORE_PARALLEL"):
        dim_sem = (pltpu.CORE_PARALLEL,)
    else:
        dim_sem = ("parallel",)

    kernel = functools.partial(_policy_kernel, n_hidden, compute_dtype)
    flat_wb = [x for pair in zip(ws_p, bs_p) for x in pair]

    out_pad = pl.pallas_call(
        kernel,
        out_shape=jax.ShapeDtypeStruct((b_pad, n_pad), out_dtype),
        grid_spec=pltpu.PrefetchScalarGridSpec(
            num_scalar_prefetch=0,
            grid=grid,
            in_specs=in_specs,
            out_specs=out_specs,
        ),
        compiler_params=pltpu.CompilerParams(
            dimension_semantics=dim_sem,
            vmem_limit_bytes=vmem_limit,
        ),
    )(s_in, *flat_wb, w_out_p, b_out_p, scale_vec, bias_vec, mean_mask)

    mean = out_pad[:batch, :d_action].astype(jnp.float32)
    std = out_pad[:batch, d_action:two_da].astype(jnp.float32)
    return mean, std


def normal_policy_reference(s, hidden_ws, hidden_bs, w_out, b_out,
                            action_scale, action_bias,
                            log_std_min=LOG_STD_MIN, log_std_max=LOG_STD_MAX,
                            compute_dtype=jnp.bfloat16):
    """Pure-JAX reference with the same dtype strategy (bf16 matmuls, f32 epilogue)."""
    h = jnp.asarray(s).astype(compute_dtype)
    for w, b in zip(hidden_ws, hidden_bs):
        z = jnp.dot(h, jnp.asarray(w).astype(compute_dtype),
                    preferred_element_type=jnp.float32) + jnp.asarray(b, jnp.float32)
        h = jnp.maximum(z, 0.0).astype(compute_dtype)
    out = jnp.dot(h, jnp.asarray(w_out).astype(compute_dtype),
                  preferred_element_type=jnp.float32) + jnp.asarray(b_out, jnp.float32)
    d_action = w_out.shape[1] // 2
    mean_raw, log_std_raw = out[:, :d_action], out[:, d_action:]
    mean = jnp.tanh(mean_raw) * jnp.asarray(action_scale, jnp.float32) \
        + jnp.asarray(action_bias, jnp.float32)
    log_std = log_std_min + 0.5 * (jnp.tanh(log_std_raw) + 1.0) * (log_std_max - log_std_min)
    return mean, jnp.exp(log_std)


if __name__ == "__main__":
    key = jax.random.PRNGKey(0)
    batch, d_state, d_action, d_hidden, n_hidden = 4, 16, 3, 32, 2

    keys = jax.random.split(key, 2 * (n_hidden + 1) + 1)
    s = jax.random.normal(keys[0], (batch, d_state), jnp.float32)

    hidden_ws, hidden_bs = [], []
    d_in = d_state
    for l in range(n_hidden):
        w = jax.random.normal(keys[1 + 2 * l], (d_in, d_hidden), jnp.float32) / np.sqrt(d_in)
        b = jax.random.normal(keys[2 + 2 * l], (d_hidden,), jnp.float32) * 0.1
        hidden_ws.append(w)
        hidden_bs.append(b)
        d_in = d_hidden
    w_out = jax.random.normal(keys[-2], (d_hidden, 2 * d_action), jnp.float32) / np.sqrt(d_hidden)
    b_out = jax.random.normal(keys[-1], (2 * d_action,), jnp.float32) * 0.1

    action_high = np.array([1.0, 2.0, 0.5], dtype=np.float32)
    action_low = np.array([-1.0, 0.0, -0.5], dtype=np.float32)
    action_scale = (action_high - action_low) / 2.0
    action_bias = (action_high + action_low) / 2.0

    mean, std = normal_policy_forward(
        s, hidden_ws, hidden_bs, w_out, b_out, action_scale, action_bias)
    jax.block_until_ready((mean, std))

    mean_ref, std_ref = normal_policy_reference(
        s, hidden_ws, hidden_bs, w_out, b_out, action_scale, action_bias)

    assert mean.shape == (batch, d_action) and std.shape == (batch, d_action)
    np.testing.assert_allclose(np.asarray(mean), np.asarray(mean_ref), rtol=2e-2, atol=2e-2)
    np.testing.assert_allclose(np.asarray(std), np.asarray(std_ref), rtol=2e-2, atol=2e-2)

    print("KERNEL_OK")
</pallas_src>

<mosaic_0001>
module attributes {stable_mosaic.version = 11 : i64} {
  func.func @_policy_kernel(%arg0: i32, %arg1: memref<4x16xf32, #tpu.memory_space<vmem>>, %arg2: memref<16x128xbf16, #tpu.memory_space<vmem>>, %arg3: memref<1x128xf32, #tpu.memory_space<vmem>>, %arg4: memref<128x128xbf16, #tpu.memory_space<vmem>>, %arg5: memref<1x128xf32, #tpu.memory_space<vmem>>, %arg6: memref<128x128xbf16, #tpu.memory_space<vmem>>, %arg7: memref<1x128xf32, #tpu.memory_space<vmem>>, %arg8: memref<1x128xf32, #tpu.memory_space<vmem>>, %arg9: memref<1x128xf32, #tpu.memory_space<vmem>>, %arg10: memref<1x128xf32, #tpu.memory_space<vmem>>, %arg11: memref<4x128xbf16, #tpu.memory_space<vmem>>) attributes {dimension_semantics = [#tpu.dimension_semantics<parallel>], iteration_bounds = array<i64: 1>, scalar_prefetch = 0 : i64, scratch_operands = 0 : i64, tpu.core_type = #tpu.core_type<tc>, window_params = [{transform_indices = @transform_0, window_bounds = array<i64: 4, 16>}, {pipeline_mode = #tpu.pipeline_mode<synchronous>, transform_indices = @transform_1, window_bounds = array<i64: 16, 128>}, {pipeline_mode = #tpu.pipeline_mode<synchronous>, transform_indices = @transform_2, window_bounds = array<i64: 1, 128>}, {pipeline_mode = #tpu.pipeline_mode<synchronous>, transform_indices = @transform_3, window_bounds = array<i64: 128, 128>}, {pipeline_mode = #tpu.pipeline_mode<synchronous>, transform_indices = @transform_4, window_bounds = array<i64: 1, 128>}, {pipeline_mode = #tpu.pipeline_mode<synchronous>, transform_indices = @transform_5, window_bounds = array<i64: 128, 128>}, {pipeline_mode = #tpu.pipeline_mode<synchronous>, transform_indices = @transform_6, window_bounds = array<i64: 1, 128>}, {pipeline_mode = #tpu.pipeline_mode<synchronous>, transform_indices = @transform_7, window_bounds = array<i64: 1, 128>}, {pipeline_mode = #tpu.pipeline_mode<synchronous>, transform_indices = @transform_8, window_bounds = array<i64: 1, 128>}, {pipeline_mode = #tpu.pipeline_mode<synchronous>, transform_indices = @transform_9, window_bounds = array<i64: 1, 128>}, {transform_indices = @transform_10, window_bounds = array<i64: 4, 128>}]} {
    %c0 = arith.constant 0 : index
    %c0_0 = arith.constant 0 : index
    %0 = vector.load %arg1[%c0, %c0_0] : memref<4x16xf32, #tpu.memory_space<vmem>>, vector<4x16xf32>
    %1 = arith.truncf %0 : vector<4x16xf32> to vector<4x16xbf16>
    %c0_1 = arith.constant 0 : index
    %c0_2 = arith.constant 0 : index
    %2 = vector.load %arg2[%c0_1, %c0_2] : memref<16x128xbf16, #tpu.memory_space<vmem>>, vector<16x128xbf16>
    %c0_3 = arith.constant 0 : index
    %c0_4 = arith.constant 0 : index
    %3 = vector.load %arg3[%c0_3, %c0_4] : memref<1x128xf32, #tpu.memory_space<vmem>>, vector<1x128xf32>
    %cst = arith.constant dense<0.000000e+00> : vector<4x128xf32>
    %4 = tpu.matmul %1, %2, %cst {dimension_numbers = #tpu.dot_dimension_numbers<[1], [0], [0], [1], [0, 0, 1, 1], [], []>} : vector<4x16xbf16>, vector<16x128xbf16>, vector<4x128xf32> -> vector<4x128xf32>
    %5 = vector.broadcast %3 : vector<1x128xf32> to vector<4x128xf32>
    %6 = arith.addf %4, %5 : vector<4x128xf32>
    %cst_5 = arith.constant 0.000000e+00 : f32
    %7 = vector.broadcast %cst_5 : f32 to vector<4x128xf32>
    %8 = arith.maximumf %6, %7 : vector<4x128xf32>
    %9 = arith.truncf %8 : vector<4x128xf32> to vector<4x128xbf16>
    %c0_6 = arith.constant 0 : index
    %c0_7 = arith.constant 0 : index
    %10 = vector.load %arg4[%c0_6, %c0_7] : memref<128x128xbf16, #tpu.memory_space<vmem>>, vector<128x128xbf16>
    %c0_8 = arith.constant 0 : index
    %c0_9 = arith.constant 0 : index
    %11 = vector.load %arg5[%c0_8, %c0_9] : memref<1x128xf32, #tpu.memory_space<vmem>>, vector<1x128xf32>
    %cst_10 = arith.constant dense<0.000000e+00> : vector<4x128xf32>
    %12 = tpu.matmul %9, %10, %cst_10 {dimension_numbers = #tpu.dot_dimension_numbers<[1], [0], [0], [1], [0, 0, 1, 1], [], []>} : vector<4x128xbf16>, vector<128x128xbf16>, vector<4x128xf32> -> vector<4x128xf32>
    %13 = vector.broadcast %11 : vector<1x128xf32> to vector<4x128xf32>
    %14 = arith.addf %12, %13 : vector<4x128xf32>
    %cst_11 = arith.constant 0.000000e+00 : f32
    %15 = vector.broadcast %cst_11 : f32 to vector<4x128xf32>
    %16 = arith.maximumf %14, %15 : vector<4x128xf32>
    %17 = arith.truncf %16 : vector<4x128xf32> to vector<4x128xbf16>
    %c0_12 = arith.constant 0 : index
    %c0_13 = arith.constant 0 : index
    %18 = vector.load %arg6[%c0_12, %c0_13] : memref<128x128xbf16, #tpu.memory_space<vmem>>, vector<128x128xbf16>
    %c0_14 = arith.constant 0 : index
    %c0_15 = arith.constant 0 : index
    %19 = vector.load %arg7[%c0_14, %c0_15] : memref<1x128xf32, #tpu.memory_space<vmem>>, vector<1x128xf32>
    %cst_16 = arith.constant dense<0.000000e+00> : vector<4x128xf32>
    %20 = tpu.matmul %17, %18, %cst_16 {dimension_numbers = #tpu.dot_dimension_numbers<[1], [0], [0], [1], [0, 0, 1, 1], [], []>} : vector<4x128xbf16>, vector<128x128xbf16>, vector<4x128xf32> -> vector<4x128xf32>
    %21 = vector.broadcast %19 : vector<1x128xf32> to vector<4x128xf32>
    %22 = arith.addf %20, %21 : vector<4x128xf32>
    %23 = math.tanh %22 : vector<4x128xf32>
    %c0_17 = arith.constant 0 : index
    %c0_18 = arith.constant 0 : index
    %24 = vector.load %arg8[%c0_17, %c0_18] : memref<1x128xf32, #tpu.memory_space<vmem>>, vector<1x128xf32>
    %25 = vector.broadcast %24 : vector<1x128xf32> to vector<4x128xf32>
    %26 = arith.mulf %23, %25 : vector<4x128xf32>
    %c0_19 = arith.constant 0 : index
    %c0_20 = arith.constant 0 : index
    %27 = vector.load %arg9[%c0_19, %c0_20] : memref<1x128xf32, #tpu.memory_space<vmem>>, vector<1x128xf32>
    %28 = vector.broadcast %27 : vector<1x128xf32> to vector<4x128xf32>
    %29 = arith.addf %26, %28 : vector<4x128xf32>
    %c0_21 = arith.constant 0 : index
    %c0_22 = arith.constant 0 : index
    %30 = vector.load %arg10[%c0_21, %c0_22] : memref<1x128xf32, #tpu.memory_space<vmem>>, vector<1x128xf32>
    %31 = vector.broadcast %30 : vector<1x128xf32> to vector<4x128xf32>
    %32 = arith.mulf %31, %29 : vector<4x128xf32>
    %cst_23 = arith.constant 1.000000e+00 : f32
    %33 = vector.broadcast %cst_23 : f32 to vector<1x128xf32>
    %34 = arith.subf %33, %30 : vector<1x128xf32>
    %35 = math.exp %29 : vector<4x128xf32>
    %36 = vector.broadcast %34 : vector<1x128xf32> to vector<4x128xf32>
    %37 = arith.mulf %36, %35 : vector<4x128xf32>
    %38 = arith.addf %32, %37 : vector<4x128xf32>
    %39 = arith.truncf %38 : vector<4x128xf32> to vector<4x128xbf16>
    %c0_24 = arith.constant 0 : index
    %c0_25 = arith.constant 0 : index
    %40 = vector.load %arg11[%c0_24, %c0_25] : memref<4x128xbf16, #tpu.memory_space<vmem>>, vector<4x128xbf16>
    tpu.vector_store %arg11[%c0_24, %c0_25], %39 {strides = array<i32>} : memref<4x128xbf16, #tpu.memory_space<vmem>>, vector<4x128xbf16>,
    return
  }
  func.func @transform_0(%arg0: i32) -> (i32, i32) {
    %c0_i32 = arith.constant 0 : i32
    %c0_i32_0 = arith.constant 0 : i32
    return %arg0, %c0_i32 : i32, i32
  }
  func.func @transform_1(%arg0: i32) -> (i32, i32) {
    %c0_i32 = arith.constant 0 : i32
    %c0_i32_0 = arith.constant 0 : i32
    %c0_i32_1 = arith.constant 0 : i32
    return %c0_i32, %c0_i32_0 : i32, i32
  }
  func.func @transform_2(%arg0: i32) -> (i32, i32) {
    %c0_i32 = arith.constant 0 : i32
    %c0_i32_0 = arith.constant 0 : i32
    %c0_i32_1 = arith.constant 0 : i32
    return %c0_i32, %c0_i32_0 : i32, i32
  }
  func.func @transform_3(%arg0: i32) -> (i32, i32) {
    %c0_i32 = arith.constant 0 : i32
    %c0_i32_0 = arith.constant 0 : i32
    %c0_i32_1 = arith.constant 0 : i32
    return %c0_i32, %c0_i32_0 : i32, i32
  }
  func.func @transform_4(%arg0: i32) -> (i32, i32) {
    %c0_i32 = arith.constant 0 : i32
    %c0_i32_0 = arith.constant 0 : i32
    %c0_i32_1 = arith.constant 0 : i32
    return %c0_i32, %c0_i32_0 : i32, i32
  }
  func.func @transform_5(%arg0: i32) -> (i32, i32) {
    %c0_i32 = arith.constant 0 : i32
    %c0_i32_0 = arith.constant 0 : i32
    %c0_i32_1 = arith.constant 0 : i32
    return %c0_i32, %c0_i32_0 : i32, i32
  }
  func.func @transform_6(%arg0: i32) -> (i32, i32) {
    %c0_i32 = arith.constant 0 : i32
    %c0_i32_0 = arith.constant 0 : i32
    %c0_i32_1 = arith.constant 0 : i32
    return %c0_i32, %c0_i32_0 : i32, i32
  }
  func.func @transform_7(%arg0: i32) -> (i32, i32) {
    %c0_i32 = arith.constant 0 : i32
    %c0_i32_0 = arith.constant 0 : i32
    %c0_i32_1 = arith.constant 0 : i32
    return %c0_i32, %c0_i32_0 : i32, i32
  }
  func.func @transform_8(%arg0: i32) -> (i32, i32) {
    %c0_i32 = arith.constant 0 : i32
    %c0_i32_0 = arith.constant 0 : i32
    %c0_i32_1 = arith.constant 0 : i32
    return %c0_i32, %c0_i32_0 : i32, i32
  }
  func.func @transform_9(%arg0: i32) -> (i32, i32) {
    %c0_i32 = arith.constant 0 : i32
    %c0_i32_0 = arith.constant 0 : i32
    %c0_i32_1 = arith.constant 0 : i32
    return %c0_i32, %c0_i32_0 : i32, i32
  }
  func.func @transform_10(%arg0: i32) -> (i32, i32) {
    %c0_i32 = arith.constant 0 : i32
    %c0_i32_0 = arith.constant 0 : i32
    return %arg0, %c0_i32 : i32, i32
  }
}

</mosaic_0001>

<llo_original>
// kernel: tpu_custom_call.1
$region0: #{tpu_custom_call.1}
  #allocation0 [shape = 'u32[]', space=smem, size = 0x4, offset = 0x4, fixed_abs, tag = 'smem constant byte address 0x4 - core index']
  #allocation1 [shape = 'u32[144,128]{1,0:T(1,128)}', space=vmem, size = 0x12000, scoped, tag = 'internal scratch']
  %s0 = inlined_call_operand.hbm [shape: f32[4,16], index: 0, kind: input, shape index: {}]
  %s1 = inlined_call_operand.hbm [shape: bf16[16,128], index: 1, kind: input, shape index: {}]
  %s2 = inlined_call_operand.vmem [shape: f32[1,128], index: 2, kind: input, shape index: {}]
  %s3 = inlined_call_operand.hbm [shape: bf16[128,128], index: 3, kind: input, shape index: {}]
  %s4 = inlined_call_operand.vmem [shape: f32[1,128], index: 4, kind: input, shape index: {}]
  %s5 = inlined_call_operand.hbm [shape: bf16[128,128], index: 5, kind: input, shape index: {}]
  %s6 = inlined_call_operand.vmem [shape: f32[1,128], index: 6, kind: input, shape index: {}]
  %s7 = inlined_call_operand.vmem [shape: f32[1,128], index: 7, kind: input, shape index: {}]
  %s8 = inlined_call_operand.vmem [shape: f32[1,128], index: 8, kind: input, shape index: {}]
  %s9 = inlined_call_operand.vmem [shape: f32[1,128], index: 9, kind: input, shape index: {}]
  %s10 = inlined_call_operand.hbm [shape: bf16[4,128], index: 10, kind: output, shape index: {}]
  %s11 = sld [smem:[#allocation0]]
  $region66: #{tpu_custom_call.1} parent=0
    _
  %s13 = ssub.s32 1, %s11
  %s14 = scalar_select 0, %s13, %s11
  $region1: #{tpu_custom_call.1} parent=0
    #allocation2 [shape = 'u8[2048]{0}', space=vmem, size = 0x800, scoped, tag = 'input window, operand 0, single buffered']
    #allocation3 [shape = 's32[1]{0}', space=sflag, size = 0x4, scoped, tag = 'scoped memory for tpu_custom_call.1']
    #allocation4 [shape = 's32[1]{0}', space=sflag, size = 0x4, scoped, tag = 'scoped memory for tpu_custom_call.1']
    #allocation5 [shape = 'u8[4096]{0}', space=vmem, size = 0x1000, scoped, tag = 'input window, operand 1, single buffered']
    #allocation6 [shape = 's32[1]{0}', space=sflag, size = 0x4, scoped, tag = 'scoped memory for tpu_custom_call.1']
    #allocation7 [shape = 'u8[32768]{0}', space=vmem, size = 0x8000, scoped, tag = 'input window, operand 3, single buffered']
    #allocation8 [shape = 'u8[32768]{0}', space=vmem, size = 0x8000, scoped, tag = 'input window, operand 5, single buffered']
    #allocation9 [shape = 's32[1]{0}', space=sflag, size = 0x4, scoped, tag = 'scoped memory for tpu_custom_call.1']
    #allocation10 [shape = 'u8[1024]{0}', space=vmem, size = 0x400, scoped, tag = 'output window, operand 0, single buffered']
    %15 = vsyncpa [#allocation3], 0
    %16 = vsyncpa [#allocation6], 0
    %17 = vsyncpa [#allocation9], 0
    %18 = vsyncpa [#allocation4], 0
    // Predicated region
    $region2: #{tpu_custom_call.1} parent=1 // pred_check
      _
    $region3: #{tpu_custom_call.1} parent=1 // pred_check_branch
      %20 = sbr.rel (0) target = $region5
    $region4: #{tpu_custom_call.1} parent=1 // pred_region
      %s22 = ssub.s32 64, 64
      %23 = vsyncadd [#allocation3], %s22
      %s25 = sshll.u32 [#allocation2], 4
      %s26 = int_to_ptr.vmem [resolvable:$true] %s25
      %28 = dma.hbm_to_vmem [thread:$0]  %s0, 64, %s26, [#allocation3]
    $region5: #{tpu_custom_call.1} parent=1 // pred_fallthru
      _
    // Predicated region
    $region6: #{tpu_custom_call.1} parent=1 // pred_check
      _
    $region7: #{tpu_custom_call.1} parent=1 // pred_check_branch
      %30 = sbr.rel (0) target = $region9
    $region8: #{tpu_custom_call.1} parent=1 // pred_region
      %s32 = ssub.s32 128, 128
      %33 = vsyncadd [#allocation6], %s32
      %s34 = sshll.u32 [#allocation5], 4
      %s35 = int_to_ptr.vmem [resolvable:$true] %s34
      %40 = dma.hbm_to_vmem [thread:$0]  %s1, 128, %s35, [#allocation6], 64, 64, 4
    $region9: #{tpu_custom_call.1} parent=1 // pred_fallthru
      _
    // Predicated region
    $region10: #{tpu_custom_call.1} parent=1 // pred_check
      _
    $region11: #{tpu_custom_call.1} parent=1 // pred_check_branch
      %42 = sbr.rel (0) target = $region13
    $region12: #{tpu_custom_call.1} parent=1 // pred_region
      _
    $region13: #{tpu_custom_call.1} parent=1 // pred_fallthru
      _
    // Predicated region
    $region14: #{tpu_custom_call.1} parent=1 // pred_check
      _
    $region15: #{tpu_custom_call.1} parent=1 // pred_check_branch
      %44 = sbr.rel (0) target = $region17
    $region16: #{tpu_custom_call.1} parent=1 // pred_region
      %s46 = ssub.s32 1024, 1024
      %47 = vsyncadd [#allocation6], %s46
      %s48 = sshll.u32 [#allocation7], 4
      %s49 = int_to_ptr.vmem [resolvable:$true] %s48
      %54 = dma.hbm_to_vmem [thread:$0]  %s3, 1024, %s49, [#allocation6], 64, 64, 4
    $region17: #{tpu_custom_call.1} parent=1 // pred_fallthru
      _
    // Predicated region
    $region18: #{tpu_custom_call.1} parent=1 // pred_check
      _
    $region19: #{tpu_custom_call.1} parent=1 // pred_check_branch
      %56 = sbr.rel (0) target = $region21
    $region20: #{tpu_custom_call.1} parent=1 // pred_region
      _
    $region21: #{tpu_custom_call.1} parent=1 // pred_fallthru
      _
    // Predicated region
    $region22: #{tpu_custom_call.1} parent=1 // pred_check
      _
    $region23: #{tpu_custom_call.1} parent=1 // pred_check_branch
      %58 = sbr.rel (0) target = $region25
    $region24: #{tpu_custom_call.1} parent=1 // pred_region
      %s60 = ssub.s32 1024, 1024
      %61 = vsyncadd [#allocation9], %s60
      %s62 = sshll.u32 [#allocation8], 4
      %s63 = int_to_ptr.vmem [resolvable:$true] %s62
      %68 = dma.hbm_to_vmem [thread:$0]  %s5, 1024, %s63, [#allocation9], 64, 64, 4
    $region25: #{tpu_custom_call.1} parent=1 // pred_fallthru
      _
    // Predicated region
    $region26: #{tpu_custom_call.1} parent=1 // pred_check
      _
    $region27: #{tpu_custom_call.1} parent=1 // pred_check_branch
      %70 = sbr.rel (0) target = $region29
    $region28: #{tpu_custom_call.1} parent=1 // pred_region
      _
    $region29: #{tpu_custom_call.1} parent=1 // pred_fallthru
      _
    // Predicated region
    $region30: #{tpu_custom_call.1} parent=1 // pred_check
      _
    $region31: #{tpu_custom_call.1} parent=1 // pred_check_branch
      %72 = sbr.rel (0) target = $region33
    $region32: #{tpu_custom_call.1} parent=1 // pred_region
      _
    $region33: #{tpu_custom_call.1} parent=1 // pred_fallthru
      _
    // Predicated region
    $region34: #{tpu_custom_call.1} parent=1 // pred_check
      _
    $region35: #{tpu_custom_call.1} parent=1 // pred_check_branch
      %74 = sbr.rel (0) target = $region37
    $region36: #{tpu_custom_call.1} parent=1 // pred_region
      _
    $region37: #{tpu_custom_call.1} parent=1 // pred_fallthru
      _
    // Predicated region
    $region38: #{tpu_custom_call.1} parent=1 // pred_check
      _
    $region39: #{tpu_custom_call.1} parent=1 // pred_check_branch
      %76 = sbr.rel (0) target = $region41
    $region40: #{tpu_custom_call.1} parent=1 // pred_region
      _
    $region41: #{tpu_custom_call.1} parent=1 // pred_fallthru
      _
    // Predicated region
    $region42: #{tpu_custom_call.1} parent=1 // pred_check
      _
    $region43: #{tpu_custom_call.1} parent=1 // pred_check_branch
      %78 = sbr.rel (0) target = $region45
    $region44: #{tpu_custom_call.1} parent=1 // pred_region
      %79 = dma.done [#allocation3], 64
    $region45: #{tpu_custom_call.1} parent=1 // pred_fallthru
      _
    // Predicated region
    $region46: #{tpu_custom_call.1} parent=1 // pred_check
      _
    $region47: #{tpu_custom_call.1} parent=1 // pred_check_branch
      %81 = sbr.rel (0) target = $region49
    $region48: #{tpu_custom_call.1} parent=1 // pred_region
      %82 = dma.done [#allocation6], 128
    $region49: #{tpu_custom_call.1} parent=1 // pred_fallthru
      _
    // Predicated region
    $region50: #{tpu_custom_call.1} parent=1 // pred_check
      _
    $region51: #{tpu_custom_call.1} parent=1 // pred_check_branch
      %84 = sbr.rel (0) target = $region53
    $region52: #{tpu_custom_call.1} parent=1 // pred_region
      %85 = dma.done [#allocation6], 1024
    $region53: #{tpu_custom_call.1} parent=1 // pred_fallthru
      _
    // Predicated region
    $region54: #{tpu_custom_call.1} parent=1 // pred_check
      _
    $region55: #{tpu_custom_call.1} parent=1 // pred_check_branch
      %87 = sbr.rel (0) target = $region57
    $region56: #{tpu_custom_call.1} parent=1 // pred_region
      %88 = dma.done [#allocation9], 1024
    $region57: #{tpu_custom_call.1} parent=1 // pred_fallthru
      _
    %v90 = vld [vmem:[#allocation2] sm:$0xf]
    %v91 = vpack.c.bf16 %v90, %v90
    %v92 = vld [vmem:[#allocation5] sm:$0xf]
    %v93 = vld [vmem:[#allocation5 + $0x4] sm:$0xf]
    %v94 = vld [vmem:[%s2] sm:$0x1]
    %v96 = vlaneseq
    %v97 = vshrl.u32 %v96, 7
    %v98 = vsub.s32 0, %v97
    %v99 = vrot.slane %v94, %v98
    %v103 = vunpack.c.l.b16 %v92
    %v104 = vunpack.c.l.b16 %v93
    %v105 = vpack.c.b16 %v104, %v103
    %vm107 = vcmask 130048
    %v109 = vsel %vm107, %v91, 0
    %111 = vmatprep.subr.bf16.mxu0 0
    %112 = vmatpush1.bf16.msra.mxu0 %v105
    %113 = vmatprep.subr.bf16.mxu0 0
    %114 = vmatpush1.bf16.msra.mxu0 0
    %115 = vmatprep.subr.bf16.mxu0 0
    %116 = vmatpush1.bf16.msra.mxu0 0
    %117 = vmatprep.subr.bf16.mxu0 0
    %118 = vmatpush1.bf16.msra.mxu0 0
    %119 = vmatprep.subr.bf16.mxu0 0
    %120 = vmatpush1.bf16.msra.mxu0 0
    %121 = vmatprep.subr.bf16.mxu0 0
    %122 = vmatpush1.bf16.msra.mxu0 0
    %123 = vmatprep.subr.bf16.mxu0 0
    %124 = vmatpush1.bf16.msra.mxu0 0
    %125 = vmatprep.subr.bf16.mxu0 0
    %126 = vmatpush1.bf16.msra.mxu0 0
    %127 = vmatprep.subr.bf16.mxu0 0
    %128 = vmatpush1.bf16.msra.mxu0 0
    %129 = vmatprep.subr.bf16.mxu0 0
    %130 = vmatpush1.bf16.msra.mxu0 0
    %131 = vmatprep.subr.bf16.mxu0 0
    %132 = vmatpush1.bf16.msra.mxu0 0
    %133 = vmatprep.subr.bf16.mxu0 0
    %134 = vmatpush1.bf16.msra.mxu0 0
    %135 = vmatprep.subr.bf16.mxu0 0
    %136 = vmatpush1.bf16.msra.mxu0 0
    %137 = vmatprep.subr.bf16.mxu0 0
    %138 = vmatpush1.bf16.msra.mxu0 0
    %139 = vmatprep.subr.bf16.mxu0 0
    %140 = vmatpush1.bf16.msra.mxu0 0
    %141 = vmatprep.subr.bf16.mxu0 0
    %142 = vmatpush1.bf16.msra.mxu0 0
    %143 = vmatprep.mubr.bf16.mxu0 0
    %144 = vmatmul.mubr.bf16.gmra.mrb[0].mxu0 %v109
    %v145 = vpop.f32.mrb[0].mxu0
    %v146 = vadd.f32 %v99, %v145
    %v147 = vpop.f32.mrb[0].mxu0
    %v148 = vpop.f32.mrb[0].mxu0
    %v149 = vpop.f32.mrb[0].mxu0
    %150 = vdwg.mxu0
    %v151 = vmax.f32 %v146, 0.0
    %v152 = vpack.c.bf16 %v151, %v151
    %v153 = vld [vmem:[#allocation7] sm:$0xf]
    %v154 = vld [vmem:[#allocation7 + $0x4] sm:$0xf]
    %v155 = vld [vmem:[#allocation7 + $0x8] sm:$0xf]
    %v156 = vld [vmem:[#allocation7 + $0xc] sm:$0xf]
    %v157 = vld [vmem:[#allocation7 + $0x10] sm:$0xf]
    %v158 = vld [vmem:[#allocation7 + $0x14] sm:$0xf]
    %v159 = vld [vmem:[#allocation7 + $0x18] sm:$0xf]
    %v160 = vld [vmem:[#allocation7 + $0x1c] sm:$0xf]
    %v161 = vld [vmem:[#allocation7 + $0x20] sm:$0xf]
    %v162 = vld [vmem:[#allocation7 + $0x24] sm:$0xf]
    %v163 = vld [vmem:[#allocation7 + $0x28] sm:$0xf]
    %v164 = vld [vmem:[#allocation7 + $0x2c] sm:$0xf]
    %v165 = vld [vmem:[#allocation7 + $0x30] sm:$0xf]
    %v166 = vld [vmem:[#allocation7 + $0x34] sm:$0xf]
    %v167 = vld [vmem:[#allocation7 + $0x38] sm:$0xf]
    %v168 = vld [vmem:[#allocation7 + $0x3c] sm:$0xf]
    %v169 = vld [vmem:[%s4] sm:$0x1]
    %v171 = vlaneseq
    %v172 = vshrl.u32 %v171, 7
    %v173 = vsub.s32 0, %v172
    %v174 = vrot.slane %v169, %v173
    %v192 = vunpack.c.l.b16 %v153
    %v193 = vunpack.c.l.b16 %v154
    %v194 = vunpack.c.l.b16 %v155
    %v195 = vunpack.c.l.b16 %v156
    %v196 = vunpack.c.l.b16 %v157
    %v197 = vunpack.c.l.b16 %v158
    %v198 = vunpack.c.l.b16 %v159
    %v199 = vunpack.c.l.b16 %v160
    %v200 = vunpack.c.l.b16 %v161
    %v201 = vunpack.c.l.b16 %v162
    %v202 = vunpack.c.l.b16 %v163
    %v203 = vunpack.c.l.b16 %v164
    %v204 = vunpack.c.l.b16 %v165
    %v205 = vunpack.c.l.b16 %v166
    %v206 = vunpack.c.l.b16 %v167
    %v207 = vunpack.c.l.b16 %v168
    %v208 = vpack.c.b16 %v193, %v192
    %v209 = vpack.c.b16 %v195, %v194
    %v210 = vpack.c.b16 %v197, %v196
    %v211 = vpack.c.b16 %v199, %v198
    %v212 = vpack.c.b16 %v201, %v200
    %v213 = vpack.c.b16 %v203, %v202
    %v214 = vpack.c.b16 %v205, %v204
    %v215 = vpack.c.b16 %v207, %v206
    %224 = vmatprep.subr.bf16.mxu0 0
    %225 = vmatpush1.bf16.msra.mxu0 %v208
    %226 = vmatprep.subr.bf16.mxu0 0
    %227 = vmatpush1.bf16.msra.mxu0 %v209
    %228 = vmatprep.subr.bf16.mxu0 0
    %229 = vmatpush1.bf16.msra.mxu0 %v210
    %230 = vmatprep.subr.bf16.mxu0 0
    %231 = vmatpush1.bf16.msra.mxu0 %v211
    %232 = vmatprep.subr.bf16.mxu0 0
    %233 = vmatpush1.bf16.msra.mxu0 %v212
    %234 = vmatprep.subr.bf16.mxu0 0
    %235 = vmatpush1.bf16.msra.mxu0 %v213
    %236 = vmatprep.subr.bf16.mxu0 0
    %237 = vmatpush1.bf16.msra.mxu0 %v214
    %238 = vmatprep.subr.bf16.mxu0 0
    %239 = vmatpush1.bf16.msra.mxu0 %v215
    %240 = vmatprep.subr.bf16.mxu0 0
    %241 = vmatpush1.bf16.msra.mxu0 0
    %242 = vmatprep.subr.bf16.mxu0 0
    %243 = vmatpush1.bf16.msra.mxu0 0
    %244 = vmatprep.subr.bf16.mxu0 0
    %245 = vmatpush1.bf16.msra.mxu0 0
    %246 = vmatprep.subr.bf16.mxu0 0
    %247 = vmatpush1.bf16.msra.mxu0 0
    %248 = vmatprep.subr.bf16.mxu0 0
    %249 = vmatpush1.bf16.msra.mxu0 0
    %250 = vmatprep.subr.bf16.mxu0 0
    %251 = vmatpush1.bf16.msra.mxu0 0
    %252 = vmatprep.subr.bf16.mxu0 0
    %253 = vmatpush1.bf16.msra.mxu0 0
    %254 = vmatprep.subr.bf16.mxu0 0
    %255 = vmatpush1.bf16.msra.mxu0 0
    %256 = vmatprep.mubr.bf16.mxu0 0
    %257 = vmatmul.mubr.bf16.gmra.mrb[0].mxu0 %v152
    %v258 = vpop.f32.mrb[0].mxu0
    %v259 = vadd.f32 %v174, %v258
    %v260 = vpop.f32.mrb[0].mxu0
    %v261 = vpop.f32.mrb[0].mxu0
    %v262 = vpop.f32.mrb[0].mxu0
    %263 = vdwg.mxu0
    %v264 = vmax.f32 %v259, 0.0
    %v265 = vpack.c.bf16 %v264, %v264
    %v266 = vld [vmem:[#allocation8] sm:$0xf]
    %v267 = vld [vmem:[#allocation8 + $0x4] sm:$0xf]
    %v268 = vld [vmem:[#allocation8 + $0x8] sm:$0xf]
    %v269 = vld [vmem:[#allocation8 + $0xc] sm:$0xf]
    %v270 = vld [vmem:[#allocation8 + $0x10] sm:$0xf]
    %v271 = vld [vmem:[#allocation8 + $0x14] sm:$0xf]
    %v272 = vld [vmem:[#allocation8 + $0x18] sm:$0xf]
    %v273 = vld [vmem:[#allocation8 + $0x1c] sm:$0xf]
    %v274 = vld [vmem:[#allocation8 + $0x20] sm:$0xf]
    %v275 = vld [vmem:[#allocation8 + $0x24] sm:$0xf]
    %v276 = vld [vmem:[#allocation8 + $0x28] sm:$0xf]
    %v277 = vld [vmem:[#allocation8 + $0x2c] sm:$0xf]
    %v278 = vld [vmem:[#allocation8 + $0x30] sm:$0xf]
    %v279 = vld [vmem:[#allocation8 + $0x34] sm:$0xf]
    %v280 = vld [vmem:[#allocation8 + $0x38] sm:$0xf]
    %v281 = vld [vmem:[#allocation8 + $0x3c] sm:$0xf]
    %v282 = vld [vmem:[%s6] sm:$0x1]
    %v284 = vlaneseq
    %v285 = vshrl.u32 %v284, 7
    %v286 = vsub.s32 0, %v285
    %v287 = vrot.slane %v282, %v286
    %v305 = vunpack.c.l.b16 %v266
    %v306 = vunpack.c.l.b16 %v267
    %v307 = vunpack.c.l.b16 %v268
    %v308 = vunpack.c.l.b16 %v269
    %v309 = vunpack.c.l.b16 %v270
    %v310 = vunpack.c.l.b16 %v271
    %v311 = vunpack.c.l.b16 %v272
    %v312 = vunpack.c.l.b16 %v273
    %v313 = vunpack.c.l.b16 %v274
    %v314 = vunpack.c.l.b16 %v275
    %v315 = vunpack.c.l.b16 %v276
    %v316 = vunpack.c.l.b16 %v277
    %v317 = vunpack.c.l.b16 %v278
    %v318 = vunpack.c.l.b16 %v279
    %v319 = vunpack.c.l.b16 %v280
    %v320 = vunpack.c.l.b16 %v281
    %v321 = vpack.c.b16 %v306, %v305
    %v322 = vpack.c.b16 %v308, %v307
    %v323 = vpack.c.b16 %v310, %v309
    %v324 = vpack.c.b16 %v312, %v311
    %v325 = vpack.c.b16 %v314, %v313
    %v326 = vpack.c.b16 %v316, %v315
    %v327 = vpack.c.b16 %v318, %v317
    %v328 = vpack.c.b16 %v320, %v319
    %337 = vmatprep.subr.bf16.mxu0 0
    %338 = vmatpush1.bf16.msra.mxu0 %v321
    %339 = vmatprep.subr.bf16.mxu0 0
    %340 = vmatpush1.bf16.msra.mxu0 %v322
    %341 = vmatprep.subr.bf16.mxu0 0
    %342 = vmatpush1.bf16.msra.mxu0 %v323
    %343 = vmatprep.subr.bf16.mxu0 0
    %344 = vmatpush1.bf16.msra.mxu0 %v324
    %345 = vmatprep.subr.bf16.mxu0 0
    %346 = vmatpush1.bf16.msra.mxu0 %v325
    %347 = vmatprep.subr.bf16.mxu0 0
    %348 = vmatpush1.bf16.msra.mxu0 %v326
    %349 = vmatprep.subr.bf16.mxu0 0
    %350 = vmatpush1.bf16.msra.mxu0 %v327
    %351 = vmatprep.subr.bf16.mxu0 0
    %352 = vmatpush1.bf16.msra.mxu0 %v328
    %353 = vmatprep.subr.bf16.mxu0 0
    %354 = vmatpush1.bf16.msra.mxu0 0
    %355 = vmatprep.subr.bf16.mxu0 0
    %356 = vmatpush1.bf16.msra.mxu0 0
    %357 = vmatprep.subr.bf16.mxu0 0
    %358 = vmatpush1.bf16.msra.mxu0 0
    %359 = vmatprep.subr.bf16.mxu0 0
    %360 = vmatpush1.bf16.msra.mxu0 0
    %361 = vmatprep.subr.bf16.mxu0 0
    %362 = vmatpush1.bf16.msra.mxu0 0
    %363 = vmatprep.subr.bf16.mxu0 0
    %364 = vmatpush1.bf16.msra.mxu0 0
    %365 = vmatprep.subr.bf16.mxu0 0
    %366 = vmatpush1.bf16.msra.mxu0 0
    %367 = vmatprep.subr.bf16.mxu0 0
    %368 = vmatpush1.bf16.msra.mxu0 0
    %369 = vmatprep.mubr.bf16.mxu0 0
    %370 = vmatmul.mubr.bf16.gmra.mrb[0].mxu0 %v265
    %v371 = vpop.f32.mrb[0].mxu0
    %v372 = vadd.f32 %v287, %v371
    %v373 = vpop.f32.mrb[0].mxu0
    %v374 = vpop.f32.mrb[0].mxu0
    %v375 = vpop.f32.mrb[0].mxu0
    %376 = vdwg.mxu0
    %v377 = vtanh.pop %v372
    %v378 = vld [vmem:[%s7] sm:$0x1]
    %v380 = vlaneseq
    %v381 = vshrl.u32 %v380, 7
    %v382 = vsub.s32 0, %v381
    %v383 = vrot.slane %v378, %v382
    %v385 = vmul.f32 %v377, %v383
    %v386 = vld [vmem:[%s8] sm:$0x1]
    %v388 = vlaneseq
    %v389 = vshrl.u32 %v388, 7
    %v390 = vsub.s32 0, %v389
    %v391 = vrot.slane %v386, %v390
    %v393 = vadd.f32 %v385, %v391
    %v394 = vld [vmem:[%s9] sm:$0x1]
    %v396 = vlaneseq
    %v397 = vshrl.u32 %v396, 7
    %v398 = vsub.s32 0, %v397
    %v399 = vrot.slane %v394, %v398
    %v401 = vmul.f32 %v399, %v393
    %v402 = vsub.f32 1.0, %v394
    %v403 = vmul.f32 %v393, 1.442695
    %v404 = vpow.pop %v403
    %v406 = vlaneseq
    %v407 = vshrl.u32 %v406, 7
    %v408 = vsub.s32 0, %v407
    %v409 = vrot.slane %v402, %v408
    %v411 = vmul.f32 %v409, %v404
    %v412 = vadd.f32 %v401, %v411
    %v413 = vpack.c.bf16 %v412, %v412
    %414 = vst [vmem:[#allocation10] sm:$0x3] %v413
    // Predicated region
    $region58: #{tpu_custom_call.1} parent=1 // pred_check
      _
    $region59: #{tpu_custom_call.1} parent=1 // pred_check_branch
      %416 = sbr.rel (0) target = $region61
    $region60: #{tpu_custom_call.1} parent=1 // pred_region
      %s418 = ssub.s32 32, 32
      %419 = vsyncadd [#allocation4], %s418
      %s421 = sshll.u32 [#allocation10], 4
      %s422 = int_to_ptr.vmem [resolvable:$true] %s421
      %424 = dma.vmem_to_hbm [thread:$0]  %s422, 32, %s10, [#allocation4]
    $region61: #{tpu_custom_call.1} parent=1 // pred_fallthru
      _
    // Predicated region
    $region62: #{tpu_custom_call.1} parent=1 // pred_check
      _
    $region63: #{tpu_custom_call.1} parent=1 // pred_check_branch
      %426 = sbr.rel (0) target = $region65
    $region64: #{tpu_custom_call.1} parent=1 // pred_region
      %427 = dma.done [#allocation4], 32
    $region65: #{tpu_custom_call.1} parent=1 // pred_fallthru
      _
    %428 = vsyncpa [#allocation3], 1
    %429 = vsyncpa [#allocation6], 1
    %430 = vsyncpa [#allocation9], 1
    %431 = vsyncpa [#allocation4], 1

</llo_original>
